<compile_context>
chip_gen: v7x
topology: tpu7x:2x2x1
jax: 0.10.0
libtpu: 0.0.40
codegen_flags: <defaults>
</compile_context>

<pallas_src>
import jax
import jax.numpy as jnp
from jax.experimental import pallas as pl
from jax.experimental.pallas import tpu as pltpu


def _attn_kernel(obs_ref, wt_ref, b_ref, qw_ref, o_ref):
    # obs_ref: (TB*N, D)  -- flattened rows of TB sequences of length N
    # wt_ref : (D, D)     -- W_o.T, pre-transposed on host (in, out)
    # b_ref  : (1, D), qw_ref: (1, D)
    # o_ref  : (TB, D)
    tb, d = o_ref.shape
    n = obs_ref.shape[0] // tb
    inv_n = 1.0 / n

    # state = tanh(obs @ W_o.T + b_o)   -> (TB*N, D), f32 accumulation on the MXU
    state = jnp.tanh(
        jnp.dot(obs_ref[...], wt_ref[...], preferred_element_type=jnp.float32)
        + b_ref[...]
    )
    state3 = state.reshape(tb, n, d)          # leading-dim split; D stays the lane dim

    # Rank-1 projection as a lane reduce (VPU/XLU). q_b is omitted: softmax is
    # shift-invariant, so the scalar bias cannot change the output.
    logits = jnp.sum(state3 * qw_ref[...], axis=-1)        # (TB, N), N on lanes

    # Numerically-stable softmax over the sequence axis, kept 2-D.
    m = jnp.max(logits, axis=-1, keepdims=True)
    e = jnp.exp(logits - m)
    # Fold the mean's 1/N into the normalizer; approx reciprocal goes to the EUP.
    scale = pl.reciprocal(jnp.sum(e, axis=-1, keepdims=True), approx=True) * inv_n
    att = e * scale                                         # (TB, N)

    # O = (1/N) * sum_n state * softmax  -> (TB, D)
    o_ref[...] = jnp.sum(state3 * att[:, :, None], axis=1).astype(o_ref.dtype)


def _vmem_limit_bytes():
    """Per-generation scoped-VMEM limit: leave headroom for compiler scratch."""
    cap = 64 * 1024 * 1024  # conservative default (v7x has 64 MiB / TensorCore)
    try:
        info = pltpu.get_tpu_info()
        cap = int(getattr(info, "vmem_capacity_bytes", cap))
    except Exception:
        pass
    # 3/4 of physical, capped at ~100 MiB: ~48 MiB on v7x, ~96 MiB on v5e/v6e.
    return min((cap * 3) // 4, 100 * 1024 * 1024)


def _choose_block_b(B, N, D, itemsize, vmem_limit):
    """Pick TB from a bytes target: multi-MiB obs tiles per grid step (the kernel
    is memory-bound), capped so the per-step working set fits the VMEM budget."""
    lane = 128
    d_pad = max(D, lane)                       # assume lane padding to 128
    budget = (vmem_limit * 7) // 10
    target_tile_bytes = min(8 * 1024 * 1024, max(budget // 6, 256 * 1024))
    tb = max(1, target_tile_bytes // (N * D * itemsize))

    def footprint(t):
        rows = t * N
        obs_b = 2 * rows * d_pad * itemsize    # double-buffered input block
        st_b = 2 * rows * d_pad * 4            # f32 state + weighted-product temp
        sm_b = 4 * t * lane * 4                # logits / softmax rows
        out_b = 2 * t * d_pad * 4              # double-buffered output block
        w_b = (D + 4) * d_pad * 4              # W_o.T + bias + query rows
        return obs_b + st_b + sm_b + out_b + w_b

    while tb > 1 and footprint(tb) > budget:
        tb = max(1, tb // 2)

    if tb >= B:
        # One step would cover the whole batch.  On megacore parts prefer >=2
        # grid steps when the batch is large enough that splitting is free.
        if B * N * D * itemsize >= 4 * 1024 * 1024:
            tb = ((pl.cdiv(B, 2) + 7) // 8) * 8
        else:
            return B

    # Multi-step grid: keep the (TB, D) output block (8, 128)-tileable.
    tb = max(8, (tb // 8) * 8)
    return max(1, min(tb, B))


def recommender_attention(obs, w_o, b_o, q_w, q_b, *, block_b=None):
    """obs: (B, N, D); w_o: (D, D) torch-style (out, in); b_o: (D,);
    q_w: (1, D); q_b: (1,).  Returns (B, D) float32."""
    B, N, D = obs.shape
    del q_b  # softmax over the seq axis is shift-invariant -> scalar bias is a no-op

    # Small parameter tensors: prep once on host.
    w_t = jnp.asarray(w_o, jnp.float32).T               # (D_in, D_out): W_o.T
    b2 = jnp.asarray(b_o, jnp.float32).reshape(1, D)
    qw2 = jnp.asarray(q_w, jnp.float32).reshape(1, D)

    # Match weight dtype to a low-precision float activation so the MXU takes
    # the narrow path (accumulation stays f32 in the kernel).
    if jnp.issubdtype(obs.dtype, jnp.floating) and jnp.dtype(obs.dtype).itemsize < 4:
        w_t = w_t.astype(obs.dtype)

    itemsize = jnp.dtype(obs.dtype).itemsize
    vmem_limit = _vmem_limit_bytes()
    tb = (min(block_b, B) if block_b is not None
          else _choose_block_b(B, N, D, itemsize, vmem_limit))

    # Pad batch to a multiple of TB (zero rows give finite values; sliced off).
    B_pad = pl.cdiv(B, tb) * tb
    obs_p = obs if B_pad == B else jnp.pad(obs, ((0, B_pad - B), (0, 0), (0, 0)))
    obs2d = obs_p.reshape(B_pad * N, D)                  # free reshape (contiguous)
    grid_b = B_pad // tb

    flops = 2 * B_pad * N * D * D + 8 * B_pad * N * D
    transcendentals = B_pad * N * (D + 1) + B_pad
    bytes_accessed = (B_pad * N * D * itemsize           # obs stream (dominant)
                      + (D * D + 2 * D) * 4              # params
                      + B_pad * D * 4)                   # output

    out = pl.pallas_call(
        _attn_kernel,
        out_shape=jax.ShapeDtypeStruct((B_pad, D), jnp.float32),
        grid_spec=pltpu.PrefetchScalarGridSpec(
            num_scalar_prefetch=0,
            grid=(grid_b,),
            in_specs=[
                pl.BlockSpec((tb * N, D), lambda i: (i, 0)),   # obs row-block
                pl.BlockSpec((D, D), lambda i: (0, 0)),        # W_o.T (grid-invariant)
                pl.BlockSpec((1, D), lambda i: (0, 0)),        # b_o
                pl.BlockSpec((1, D), lambda i: (0, 0)),        # q_w
            ],
            out_specs=pl.BlockSpec((tb, D), lambda i: (i, 0)),
        ),
        compiler_params=pltpu.CompilerParams(
            dimension_semantics=("parallel",),                 # batch axis: megacore-shardable
            vmem_limit_bytes=vmem_limit,
        ),
        cost_estimate=pl.CostEstimate(
            flops=flops,
            transcendentals=transcendentals,
            bytes_accessed=bytes_accessed,
        ),
    )(obs2d, w_t, b2, qw2)

    return out[:B] if B_pad != B else out


def _reference(obs, w_o, b_o, q_w, q_b):
    state = jnp.tanh(jnp.einsum("bnd,od->bno", obs, w_o) + b_o)
    logits = jnp.einsum("bnd,od->bno", state, q_w) + q_b      # (B, N, 1)
    att = jax.nn.softmax(logits, axis=1)
    return jnp.mean(state * att, axis=1)


if __name__ == "__main__":
    B, N, D = 2, 8, 32  # batch, seq, dim_action

    key = jax.random.PRNGKey(0)
    k1, k2, k3, k4, k5 = jax.random.split(key, 5)

    obs = jax.random.normal(k1, (B, N, D), dtype=jnp.float32)

    # Deterministic "Linear" params (torch convention: weight (out, in), bias (out,))
    bound = 1.0 / jnp.sqrt(D)
    w_o = jax.random.uniform(k2, (D, D), minval=-bound, maxval=bound, dtype=jnp.float32)
    b_o = jax.random.uniform(k3, (D,), minval=-bound, maxval=bound, dtype=jnp.float32)
    q_w = jax.random.uniform(k4, (1, D), minval=-bound, maxval=bound, dtype=jnp.float32)
    q_b = jax.random.uniform(k5, (1,), minval=-bound, maxval=bound, dtype=jnp.float32)

    out = recommender_attention(obs, w_o, b_o, q_w, q_b)
    out = jax.block_until_ready(out)

    ref = _reference(obs, w_o, b_o, q_w, q_b)
    assert out.shape == (B, D)
    # Tolerance loosened slightly vs. 1e-5 because the softmax denominator uses
    # the EUP approx reciprocal; actual error stays well below this bound.
    assert jnp.allclose(out, ref, atol=1e-3, rtol=1e-3), (
        f"max err {jnp.max(jnp.abs(out - ref))}"
    )

    print("KERNEL_OK")
</pallas_src>

<mosaic_0001>
module attributes {stable_mosaic.version = 11 : i64} {
  func.func @_attn_kernel(%arg0: i32, %arg1: memref<16x32xf32, #tpu.memory_space<vmem>>, %arg2: memref<32x32xf32, #tpu.memory_space<vmem>>, %arg3: memref<1x32xf32, #tpu.memory_space<vmem>>, %arg4: memref<1x32xf32, #tpu.memory_space<vmem>>, %arg5: memref<2x32xf32, #tpu.memory_space<vmem>>) attributes {dimension_semantics = [#tpu.dimension_semantics<parallel>], iteration_bounds = array<i64: 1>, scalar_prefetch = 0 : i64, scratch_operands = 0 : i64, tpu.core_type = #tpu.core_type<tc>, window_params = [{transform_indices = @transform_0, window_bounds = array<i64: 16, 32>}, {pipeline_mode = #tpu.pipeline_mode<synchronous>, transform_indices = @transform_1, window_bounds = array<i64: 32, 32>}, {pipeline_mode = #tpu.pipeline_mode<synchronous>, transform_indices = @transform_2, window_bounds = array<i64: 1, 32>}, {pipeline_mode = #tpu.pipeline_mode<synchronous>, transform_indices = @transform_3, window_bounds = array<i64: 1, 32>}, {transform_indices = @transform_4, window_bounds = array<i64: 2, 32>}]} {
    %c0 = arith.constant 0 : index
    %c0_0 = arith.constant 0 : index
    %0 = vector.load %arg1[%c0, %c0_0] : memref<16x32xf32, #tpu.memory_space<vmem>>, vector<16x32xf32>
    %c0_1 = arith.constant 0 : index
    %c0_2 = arith.constant 0 : index
    %1 = vector.load %arg2[%c0_1, %c0_2] : memref<32x32xf32, #tpu.memory_space<vmem>>, vector<32x32xf32>
    %cst = arith.constant dense<0.000000e+00> : vector<16x32xf32>
    %2 = tpu.matmul %0, %1, %cst {dimension_numbers = #tpu.dot_dimension_numbers<[1], [0], [0], [1], [0, 0, 1, 1], [], []>} : vector<16x32xf32>, vector<32x32xf32>, vector<16x32xf32> -> vector<16x32xf32>
    %c0_3 = arith.constant 0 : index
    %c0_4 = arith.constant 0 : index
    %3 = vector.load %arg3[%c0_3, %c0_4] : memref<1x32xf32, #tpu.memory_space<vmem>>, vector<1x32xf32>
    %4 = vector.broadcast %3 : vector<1x32xf32> to vector<16x32xf32>
    %5 = arith.addf %2, %4 : vector<16x32xf32>
    %6 = math.tanh %5 : vector<16x32xf32>
    %7 = vector.shape_cast %6 : vector<16x32xf32> to vector<2x8x32xf32>
    %c0_5 = arith.constant 0 : index
    %c0_6 = arith.constant 0 : index
    %8 = vector.load %arg4[%c0_5, %c0_6] : memref<1x32xf32, #tpu.memory_space<vmem>>, vector<1x32xf32>
    %9 = vector.shape_cast %8 : vector<1x32xf32> to vector<1x1x32xf32>
    %10 = vector.broadcast %9 : vector<1x1x32xf32> to vector<2x8x32xf32>
    %11 = arith.mulf %7, %10 : vector<2x8x32xf32>
    %cst_7 = arith.constant dense<0.000000e+00> : vector<2x8xf32>
    %12 = vector.multi_reduction <add>, %11, %cst_7 [2] : vector<2x8x32xf32> to vector<2x8xf32>
    %cst_8 = arith.constant dense<0xFF800000> : vector<2xf32>
    %13 = vector.multi_reduction <maximumf>, %12, %cst_8 [1] : vector<2x8xf32> to vector<2xf32>
    %14 = vector.shape_cast %13 : vector<2xf32> to vector<2x1xf32>
    %15 = vector.broadcast %14 : vector<2x1xf32> to vector<2x8xf32>
    %16 = arith.subf %12, %15 : vector<2x8xf32>
    %17 = math.exp %16 : vector<2x8xf32>
    %cst_9 = arith.constant dense<0.000000e+00> : vector<2xf32>
    %18 = vector.multi_reduction <add>, %17, %cst_9 [1] : vector<2x8xf32> to vector<2xf32>
    %19 = vector.shape_cast %18 : vector<2xf32> to vector<2x1xf32>
    %20 = tpu.reciprocal %19 {approx = true} : vector<2x1xf32> -> vector<2x1xf32>
    %cst_10 = arith.constant 1.250000e-01 : f32
    %21 = vector.broadcast %cst_10 : f32 to vector<2x1xf32>
    %22 = arith.mulf %20, %21 : vector<2x1xf32>
    %23 = vector.broadcast %22 : vector<2x1xf32> to vector<2x8xf32>
    %24 = arith.mulf %17, %23 : vector<2x8xf32>
    %25 = vector.shape_cast %24 : vector<2x8xf32> to vector<2x8x1xf32>
    %26 = vector.broadcast %25 : vector<2x8x1xf32> to vector<2x8x32xf32>
    %27 = arith.mulf %7, %26 : vector<2x8x32xf32>
    %cst_11 = arith.constant dense<0.000000e+00> : vector<2x32xf32>
    %28 = vector.multi_reduction <add>, %27, %cst_11 [1] : vector<2x8x32xf32> to vector<2x32xf32>
    %c0_12 = arith.constant 0 : index
    %c0_13 = arith.constant 0 : index
    %29 = vector.load %arg5[%c0_12, %c0_13] : memref<2x32xf32, #tpu.memory_space<vmem>>, vector<2x32xf32>
    tpu.vector_store %arg5[%c0_12, %c0_13], %28 {strides = array<i32>} : memref<2x32xf32, #tpu.memory_space<vmem>>, vector<2x32xf32>,
    return
  }
  func.func @transform_0(%arg0: i32) -> (i32, i32) {
    %c0_i32 = arith.constant 0 : i32
    %c0_i32_0 = arith.constant 0 : i32
    return %arg0, %c0_i32 : i32, i32
  }
  func.func @transform_1(%arg0: i32) -> (i32, i32) {
    %c0_i32 = arith.constant 0 : i32
    %c0_i32_0 = arith.constant 0 : i32
    %c0_i32_1 = arith.constant 0 : i32
    return %c0_i32, %c0_i32_0 : i32, i32
  }
  func.func @transform_2(%arg0: i32) -> (i32, i32) {
    %c0_i32 = arith.constant 0 : i32
    %c0_i32_0 = arith.constant 0 : i32
    %c0_i32_1 = arith.constant 0 : i32
    return %c0_i32, %c0_i32_0 : i32, i32
  }
  func.func @transform_3(%arg0: i32) -> (i32, i32) {
    %c0_i32 = arith.constant 0 : i32
    %c0_i32_0 = arith.constant 0 : i32
    %c0_i32_1 = arith.constant 0 : i32
    return %c0_i32, %c0_i32_0 : i32, i32
  }
  func.func @transform_4(%arg0: i32) -> (i32, i32) {
    %c0_i32 = arith.constant 0 : i32
    %c0_i32_0 = arith.constant 0 : i32
    return %arg0, %c0_i32 : i32, i32
  }
}

</mosaic_0001>

<llo_original>
// kernel: tpu_custom_call.1
$region0: #{tpu_custom_call.1}
  #allocation0 [shape = 'u32[]', space=smem, size = 0x4, offset = 0x4, fixed_abs, tag = 'smem constant byte address 0x4 - core index']
  #allocation1 [shape = 'u32[144,128]{1,0:T(1,128)}', space=vmem, size = 0x12000, scoped, tag = 'internal scratch']
  %s0 = inlined_call_operand.hbm [shape: f32[16,32], index: 0, kind: input, shape index: {}]
  %s1 = inlined_call_operand.hbm [shape: f32[32,32], index: 1, kind: input, shape index: {}]
  %s2 = inlined_call_operand.vmem [shape: f32[1,32], index: 2, kind: input, shape index: {}]
  %s3 = inlined_call_operand.vmem [shape: f32[1,32], index: 3, kind: input, shape index: {}]
  %s4 = inlined_call_operand.hbm [shape: f32[2,32], index: 4, kind: output, shape index: {}]
  %s5 = sld [smem:[#allocation0]]
  $region34: #{tpu_custom_call.1} parent=0
    _
  %s7 = ssub.s32 1, %s5
  %s8 = scalar_select 0, %s7, %s5
  $region1: #{tpu_custom_call.1} parent=0
    #allocation2 [shape = 'u8[8192]{0}', space=vmem, size = 0x2000, scoped, tag = 'input window, operand 0, single buffered']
    #allocation3 [shape = 's32[1]{0}', space=sflag, size = 0x4, scoped, tag = 'scoped memory for tpu_custom_call.1']
    #allocation4 [shape = 's32[1]{0}', space=sflag, size = 0x4, scoped, tag = 'scoped memory for tpu_custom_call.1']
    #allocation5 [shape = 'u8[16384]{0}', space=vmem, size = 0x4000, scoped, tag = 'input window, operand 1, single buffered']
    #allocation6 [shape = 's32[1]{0}', space=sflag, size = 0x4, scoped, tag = 'scoped memory for tpu_custom_call.1']
    #allocation7 [shape = 'u8[1024]{0}', space=vmem, size = 0x400, scoped, tag = 'output window, operand 0, single buffered']
    %9 = vsyncpa [#allocation3], 0
    %10 = vsyncpa [#allocation6], 0
    %11 = vsyncpa [#allocation4], 0
    // Predicated region
    $region2: #{tpu_custom_call.1} parent=1 // pred_check
      _
    $region3: #{tpu_custom_call.1} parent=1 // pred_check_branch
      %13 = sbr.rel (0) target = $region5
    $region4: #{tpu_custom_call.1} parent=1 // pred_region
      %s15 = ssub.s32 256, 256
      %16 = vsyncadd [#allocation3], %s15
      %s17 = sshll.u32 [#allocation2], 4
      %s18 = int_to_ptr.vmem [resolvable:$true] %s17
      %23 = dma.hbm_to_vmem [thread:$0]  %s0, 256, %s18, [#allocation3], 128, 128, 8
    $region5: #{tpu_custom_call.1} parent=1 // pred_fallthru
      _
    // Predicated region
    $region6: #{tpu_custom_call.1} parent=1 // pred_check
      _
    $region7: #{tpu_custom_call.1} parent=1 // pred_check_branch
      %25 = sbr.rel (0) target = $region9
    $region8: #{tpu_custom_call.1} parent=1 // pred_region
      %s27 = ssub.s32 512, 512
      %28 = vsyncadd [#allocation6], %s27
      %s29 = sshll.u32 [#allocation5], 4
      %s30 = int_to_ptr.vmem [resolvable:$true] %s29
      %35 = dma.hbm_to_vmem [thread:$0]  %s1, 512, %s30, [#allocation6], 128, 128, 8
    $region9: #{tpu_custom_call.1} parent=1 // pred_fallthru
      _
    // Predicated region
    $region10: #{tpu_custom_call.1} parent=1 // pred_check
      _
    $region11: #{tpu_custom_call.1} parent=1 // pred_check_branch
      %37 = sbr.rel (0) target = $region13
    $region12: #{tpu_custom_call.1} parent=1 // pred_region
      _
    $region13: #{tpu_custom_call.1} parent=1 // pred_fallthru
      _
    // Predicated region
    $region14: #{tpu_custom_call.1} parent=1 // pred_check
      _
    $region15: #{tpu_custom_call.1} parent=1 // pred_check_branch
      %39 = sbr.rel (0) target = $region17
    $region16: #{tpu_custom_call.1} parent=1 // pred_region
      _
    $region17: #{tpu_custom_call.1} parent=1 // pred_fallthru
      _
    // Predicated region
    $region18: #{tpu_custom_call.1} parent=1 // pred_check
      _
    $region19: #{tpu_custom_call.1} parent=1 // pred_check_branch
      %41 = sbr.rel (0) target = $region21
    $region20: #{tpu_custom_call.1} parent=1 // pred_region
      %42 = dma.done [#allocation3], 256
    $region21: #{tpu_custom_call.1} parent=1 // pred_fallthru
      _
    // Predicated region
    $region22: #{tpu_custom_call.1} parent=1 // pred_check
      _
    $region23: #{tpu_custom_call.1} parent=1 // pred_check_branch
      %44 = sbr.rel (0) target = $region25
    $region24: #{tpu_custom_call.1} parent=1 // pred_region
      %45 = dma.done [#allocation6], 512
    $region25: #{tpu_custom_call.1} parent=1 // pred_fallthru
      _
    %v46 = vld [vmem:[#allocation2] sm:$0xff]
    %v47 = vld [vmem:[#allocation2 + $0x8] sm:$0xff]
    %v48 = vld [vmem:[#allocation5] sm:$0xff]
    %v49 = vld [vmem:[#allocation5 + $0x8] sm:$0xff]
    %v50 = vld [vmem:[#allocation5 + $0x10] sm:$0xff]
    %v51 = vld [vmem:[#allocation5 + $0x18] sm:$0xff]
    %v52 = vld [vmem:[%s2] sm:$0x1]
    %v54 = vlaneseq
    %v55 = vshrl.u32 %v54, 7
    %v56 = vsub.s32 0, %v55
    %v57 = vrot.slane %v52, %v56
    %vm59 = vcmask 261120
    %v61 = vsel %vm59, %v46, 0
    %v64 = vsel %vm59, %v47, 0
    %66 = vmatprep.subr.mxu0 0.0
    %67 = vmatpush1.msra.mxu0 %v48
    %68 = vmatprep.subr.mxu0 0.0
    %69 = vmatpush1.msra.mxu0 %v49
    %70 = vmatprep.subr.mxu0 0.0
    %71 = vmatpush1.msra.mxu0 %v50
    %72 = vmatprep.subr.mxu0 0.0
    %73 = vmatpush1.msra.mxu0 %v51
    %74 = vmatprep.subr.mxu0 0.0
    %75 = vmatpush1.msra.mxu0 0.0
    %76 = vmatprep.subr.mxu0 0.0
    %77 = vmatpush1.msra.mxu0 0.0
    %78 = vmatprep.subr.mxu0 0.0
    %79 = vmatpush1.msra.mxu0 0.0
    %80 = vmatprep.subr.mxu0 0.0
    %81 = vmatpush1.msra.mxu0 0.0
    %82 = vmatprep.subr.mxu0 0.0
    %83 = vmatpush1.msra.mxu0 0.0
    %84 = vmatprep.subr.mxu0 0.0
    %85 = vmatpush1.msra.mxu0 0.0
    %86 = vmatprep.subr.mxu0 0.0
    %87 = vmatpush1.msra.mxu0 0.0
    %88 = vmatprep.subr.mxu0 0.0
    %89 = vmatpush1.msra.mxu0 0.0
    %90 = vmatprep.subr.mxu0 0.0
    %91 = vmatpush1.msra.mxu0 0.0
    %92 = vmatprep.subr.mxu0 0.0
    %93 = vmatpush1.msra.mxu0 0.0
    %94 = vmatprep.subr.mxu0 0.0
    %95 = vmatpush1.msra.mxu0 0.0
    %96 = vmatprep.subr.mxu0 0.0
    %97 = vmatpush1.msra.mxu0 0.0
    %98 = vmatprep.subr.mxu0 0.0
    %99 = vmatpush1.msra.mxu0 0.0
    %100 = vmatprep.subr.mxu0 0.0
    %101 = vmatpush1.msra.mxu0 0.0
    %102 = vmatprep.subr.mxu0 0.0
    %103 = vmatpush1.msra.mxu0 0.0
    %104 = vmatprep.subr.mxu0 0.0
    %105 = vmatpush1.msra.mxu0 0.0
    %106 = vmatprep.subr.mxu0 0.0
    %107 = vmatpush1.msra.mxu0 0.0
    %108 = vmatprep.subr.mxu0 0.0
    %109 = vmatpush1.msra.mxu0 0.0
    %110 = vmatprep.subr.mxu0 0.0
    %111 = vmatpush1.msra.mxu0 0.0
    %112 = vmatprep.subr.mxu0 0.0
    %113 = vmatpush1.msra.mxu0 0.0
    %114 = vmatprep.subr.mxu0 0.0
    %115 = vmatpush1.msra.mxu0 0.0
    %116 = vmatprep.subr.mxu0 0.0
    %117 = vmatpush1.msra.mxu0 0.0
    %118 = vmatprep.subr.mxu0 0.0
    %119 = vmatpush1.msra.mxu0 0.0
    %120 = vmatprep.subr.mxu0 0.0
    %121 = vmatpush1.msra.mxu0 0.0
    %122 = vmatprep.subr.mxu0 0.0
    %123 = vmatpush1.msra.mxu0 0.0
    %124 = vmatprep.subr.mxu0 0.0
    %125 = vmatpush1.msra.mxu0 0.0
    %126 = vmatprep.subr.mxu0 0.0
    %127 = vmatpush1.msra.mxu0 0.0
    %128 = vmatprep.subr.mxu0 0.0
    %129 = vmatpush1.msra.mxu0 0.0
    %130 = vmatprep.mubr.f32.mxu0 0.0
    %131 = vmatmul.mubr.f32.gmra.mrb[0].mxu0 %v61
    %v132 = vpop.f32.mrb[0].mxu0
    %v133 = vadd.f32 %v57, %v132
    %v134 = vpop.f32.mrb[0].mxu0
    %135 = vmatprep.mubr.f32.mxu0 0.0
    %136 = vmatmul.mubr.f32.gmra.mrb[0].mxu0 %v64
    %v137 = vpop.f32.mrb[0].mxu0
    %v138 = vadd.f32 %v57, %v137
    %v139 = vpop.f32.mrb[0].mxu0
    %140 = vdwg.mxu0
    %v141 = vtanh.pop %v133
    %v142 = vtanh.pop %v138
    %v143 = vld [vmem:[%s3] sm:$0x1]
    %v145 = vlaneseq
    %v146 = vshrl.u32 %v145, 7
    %v147 = vsub.s32 0, %v146
    %v148 = vrot.slane %v143, %v147
    %v150 = vmul.f32 %v141, %v148
    %v151 = vmul.f32 %v142, %v148
    %v152 = vsel %vm59, %v150, 0.0
    %153 = vadd.xlane.f32.xlu0 %v152
    %v154 = vpop.xlane.xlu0 %153
    %v155 = vsel %vm59, %v151, 0.0
    %156 = vadd.xlane.f32.xlu0 %v155
    %v157 = vpop.xlane.xlu0 %156
    %v160 = vlaneseq
    %v161 = vand.u32 %v160, 127
    %v162 = vlaneseq
    %v163 = vshrl.u32 %v162, 7
    %v164 = vsub.s32 %v161, %v163
    %v165 = vrot.slane %v154, %v164
    %v166 = vlaneseq
    %v167 = vshrl.u32 %v166, 7
    %v168 = vsub.s32 %v161, %v167
    %v169 = vrot.slane %v157, %v168
    %vm170 = vcmask 1041409
    %v171 = vsel %vm170, %v169, %v165
    %vm173 = vcmask 58368
    %v174 = vsel %vm173, %v171, -inf
    %175 = vmax.xlane.f32.xlu0 %v174
    %v176 = vpop.xlane.xlu0 %175
    %v178 = vlaneseq
    %v179 = vshrl.u32 %v178, 7
    %v180 = vsub.s32 0, %v179
    %v181 = vrot.slane %v176, %v180
    %v182 = vlaneseq
    %v183 = vshrl.u32 %v182, 7
    %v184 = vsub.s32 1, %v183
    %v185 = vrot.slane %v176, %v184
    %v188 = vsub.f32 %v154, %v181
    %v189 = vsub.f32 %v157, %v185
    %v190 = vmul.f32 %v188, 1.442695
    %v191 = vpow.pop %v190
    %v192 = vmul.f32 %v189, 1.442695
    %v193 = vpow.pop %v192
    %196 = vset.pattern.permute.xlu0 0
    %197 = vperm.xlu0 %196, %v191
    %v198 = vpop.permute.xlu0 %197
    %199 = vset.pattern.permute.xlu0 0
    %200 = vperm.xlu0 %199, %v193
    %v201 = vpop.permute.xlu0 %200
    %v202 = vlaneseq
    %v203 = vshrl.u32 %v202, 7
    %v204 = vsub.s32 %v161, %v203
    %v205 = vrot.slane %v198, %v204
    %v206 = vlaneseq
    %v207 = vshrl.u32 %v206, 7
    %v208 = vsub.s32 %v161, %v207
    %v209 = vrot.slane %v201, %v208
    %v210 = vsel %vm170, %v209, %v205
    %v212 = vsel %vm173, %v210, 0.0
    %213 = vadd.xlane.f32.xlu0 %v212
    %v214 = vpop.xlane.xlu0 %213
    %v215 = vrcp.pop %v214
    %v216 = vmul.f32 %v215, 0.125
    %v218 = vlaneseq
    %v219 = vshrl.u32 %v218, 7
    %v220 = vsub.s32 0, %v219
    %v221 = vrot.slane %v216, %v220
    %v222 = vlaneseq
    %v223 = vshrl.u32 %v222, 7
    %v224 = vsub.s32 1, %v223
    %v225 = vrot.slane %v216, %v224
    %v228 = vmul.f32 %v191, %v221
    %v229 = vmul.f32 %v193, %v225
    %231 = vset.pattern.permute.xlu0 0
    %232 = vperm.xlu0 %231, %v228
    %v233 = vpop.permute.xlu0 %232
    %236 = vset.pattern.permute.xlu0 0
    %237 = vperm.xlu0 %236, %v229
    %v238 = vpop.permute.xlu0 %237
    %v240 = vmul.f32 %v141, %v233
    %v241 = vmul.f32 %v142, %v238
    %v242 = vsel %vm59, %v240, 0.0
    %v243 = vrot.slane %v242, 4
    %v244 = vadd.f32 %v242, %v243
    %v245 = vrot.slane %v244, 2
    %v246 = vadd.f32 %v244, %v245
    %v247 = vrot.slane %v246, 1
    %v248 = vadd.f32 %v246, %v247
    %v249 = vsel %vm59, %v241, 0.0
    %v250 = vrot.slane %v249, 4
    %v251 = vadd.f32 %v249, %v250
    %v252 = vrot.slane %v251, 2
    %v253 = vadd.f32 %v251, %v252
    %v254 = vrot.slane %v253, 1
    %v255 = vadd.f32 %v253, %v254
    %v258 = vsel %vm170, %v255, %v248
    %vm260 = vcmask 254976
    %261 = vst.msk [vmem:[#allocation7] sm:$0x3] %vm260, %v258
    // Predicated region
    $region26: #{tpu_custom_call.1} parent=1 // pred_check
      _
    $region27: #{tpu_custom_call.1} parent=1 // pred_check_branch
      %263 = sbr.rel (0) target = $region29
    $region28: #{tpu_custom_call.1} parent=1 // pred_region
      %s265 = ssub.s32 32, 32
      %266 = vsyncadd [#allocation4], %s265
      %s268 = sshll.u32 [#allocation7], 4
      %s269 = int_to_ptr.vmem [resolvable:$true] %s268
      %271 = dma.vmem_to_hbm [thread:$0]  %s269, 32, %s4, [#allocation4]
    $region29: #{tpu_custom_call.1} parent=1 // pred_fallthru
      _
    // Predicated region
    $region30: #{tpu_custom_call.1} parent=1 // pred_check
      _
    $region31: #{tpu_custom_call.1} parent=1 // pred_check_branch
      %273 = sbr.rel (0) target = $region33
    $region32: #{tpu_custom_call.1} parent=1 // pred_region
      %274 = dma.done [#allocation4], 32
    $region33: #{tpu_custom_call.1} parent=1 // pred_fallthru
      _
    %275 = vsyncpa [#allocation3], 1
    %276 = vsyncpa [#allocation6], 1
    %277 = vsyncpa [#allocation4], 1

</llo_original>
